<compile_context>
chip_gen: v7x
topology: tpu7x:2x2x1
jax: 0.10.0
libtpu: 0.0.40
codegen_flags: <defaults>
</compile_context>

<pallas_src>
import functools

import jax
import jax.numpy as jnp
from jax.experimental import pallas as pl
from jax.experimental.pallas import tpu as pltpu

FAC = 1
EPS = 1e-5
LANE = 128
SUBLANE = 8


def _round_up(n, m):
    return (n + m - 1) // m * m


def _bn_center_scale(z):
    """Training-mode BatchNorm1d normalization core (no affine):
    returns (z - batch_mean, rsqrt(biased_var + eps))."""
    mu = jnp.mean(z, axis=0, keepdims=True)
    c = z - mu
    var = jnp.mean(c * c, axis=0, keepdims=True)
    return c, jax.lax.rsqrt(var + EPS)


def _mlp_kernel(in_f, vw, w2_off, w3_off, vec_off, x_ref, p_ref, o_ref):
    x = x_ref[...]

    # block_1: Linear(in, 2*fac) + BN1.
    # Linear bias cancels against the batch-mean subtraction; gamma1/beta1 are
    # folded into W2 on the host, so only the normalization remains here.
    # Padded channels stay exactly 0 ((0-0)*rsqrt(0+eps) == 0), no NaNs.
    z1 = jnp.dot(x, p_ref[0:in_f, :], preferred_element_type=jnp.float32)
    c1, r1 = _bn_center_scale(z1)
    n1 = c1 * r1

    # block_2: Linear(2*fac, 4*fac) + BN2 + ReLU.
    # b2 and (beta1 @ W2) are batch-constant -> cancel in BN2's centering.
    # gamma2 is fused into the rsqrt scale; beta2 added before the ReLU.
    z2 = jnp.dot(n1, p_ref[w2_off:w2_off + vw, :],
                 preferred_element_type=jnp.float32)
    c2, r2 = _bn_center_scale(z2)
    g2 = p_ref[vec_off:vec_off + 1, :]
    be2 = p_ref[vec_off + 1:vec_off + 2, :]
    h = jnp.maximum(c2 * (g2 * r2) + be2, 0.0)

    # block_3: Linear(4*fac, out_features) -- lane-dense (padded) output store.
    out = jnp.dot(h, p_ref[w3_off:w3_off + vw, :],
                  preferred_element_type=jnp.float32)
    o_ref[...] = out + p_ref[vec_off + 2:vec_off + 3, :]


def init_params(key, in_features, out_features):
    """torch.nn.Linear-style init (U(-1/sqrt(fan_in), +1/sqrt(fan_in))).
    Linear weights stored transposed as [in, out]. BN affine params are given
    non-trivial random values so the host-side folding is actually exercised."""
    fac = FAC
    dims = [(in_features, 2 * fac), (2 * fac, 4 * fac), (4 * fac, out_features)]
    keys = jax.random.split(key, 10)
    params = {}
    for i, (fin, fout) in enumerate(dims, start=1):
        bound = 1.0 / jnp.sqrt(jnp.float32(fin))
        params[f"w{i}"] = jax.random.uniform(
            keys[2 * (i - 1)], (fin, fout), minval=-bound, maxval=bound,
            dtype=jnp.float32)
        params[f"b{i}"] = jax.random.uniform(
            keys[2 * (i - 1) + 1], (1, fout), minval=-bound, maxval=bound,
            dtype=jnp.float32)
    params["g1"] = jax.random.uniform(keys[6], (1, 2 * fac), minval=0.5, maxval=1.5)
    params["be1"] = jax.random.uniform(keys[7], (1, 2 * fac), minval=-0.5, maxval=0.5)
    params["g2"] = jax.random.uniform(keys[8], (1, 4 * fac), minval=0.5, maxval=1.5)
    params["be2"] = jax.random.uniform(keys[9], (1, 4 * fac), minval=-0.5, maxval=0.5)
    return params


def prepare_params(params, in_features, out_features):
    """Host-side, one-time: algebraic folding + packing every constant operand
    into one zero-padded, lane-dense (rows, vw) parameter slab (single DMA)."""
    h1, h2 = 2 * FAC, 4 * FAC
    vw = max(_round_up(h1, LANE), _round_up(h2, LANE),
             _round_up(out_features, LANE))

    # Section row offsets, each aligned to a sublane (8-row) boundary.
    w2_off = _round_up(in_features, SUBLANE)
    w3_off = w2_off + vw
    vec_off = w3_off + vw
    total_rows = _round_up(vec_off + 3, SUBLANE)

    slab = jnp.zeros((total_rows, vw), jnp.float32)

    # W1: bias dropped (cancels in BN1).
    slab = slab.at[0:in_features, 0:h1].set(params["w1"])
    # W2: fold gamma1 in; beta1 @ W2 + b2 is batch-constant -> dropped.
    w2_folded = params["g1"].reshape(h1, 1) * params["w2"]
    slab = slab.at[w2_off:w2_off + h1, 0:h2].set(w2_folded)
    # W3.
    slab = slab.at[w3_off:w3_off + h2, 0:out_features].set(params["w3"])
    # Surviving per-feature vectors: gamma2, beta2, b3 (zero-padded).
    slab = slab.at[vec_off, 0:h2].set(params["g2"].reshape(-1))
    slab = slab.at[vec_off + 1, 0:h2].set(params["be2"].reshape(-1))
    slab = slab.at[vec_off + 2, 0:out_features].set(params["b3"].reshape(-1))

    return {"slab": slab, "in_features": in_features, "vw": vw,
            "w2_off": w2_off, "w3_off": w3_off, "vec_off": vec_off,
            "out_features": out_features}


def build_forward(prepped):
    """Returns a jitted x -> [B, out_features] forward pass."""
    kernel = functools.partial(
        _mlp_kernel, prepped["in_features"], prepped["vw"],
        prepped["w2_off"], prepped["w3_off"], prepped["vec_off"])
    out_features, vw = prepped["out_features"], prepped["vw"]
    vmem = pl.BlockSpec(memory_space=pltpu.MemorySpace.VMEM)

    @jax.jit
    def fwd(x, slab):
        B = x.shape[0]
        out_padded = pl.pallas_call(
            kernel,
            out_shape=jax.ShapeDtypeStruct((B, vw), jnp.float32),
            in_specs=[vmem, vmem],
            out_specs=vmem,
            compiler_params=pltpu.CompilerParams(
                vmem_limit_bytes=32 * 1024 * 1024),
        )(x, slab)
        return out_padded[:, :out_features]

    return lambda x: fwd(x, prepped["slab"])


def _bn_ref(h, gamma, beta):
    mu = jnp.mean(h, axis=0, keepdims=True)
    var = jnp.mean((h - mu) * (h - mu), axis=0, keepdims=True)
    return (h - mu) * jax.lax.rsqrt(var + EPS) * gamma + beta


def mlp_reference(x, params):
    """Pure-JAX reference with the *unfolded* torch semantics (biases and BN
    affine applied explicitly) — validates the algebraic folding."""
    h = x @ params["w1"] + params["b1"]
    h = _bn_ref(h, params["g1"], params["be1"])
    h = h @ params["w2"] + params["b2"]
    h = _bn_ref(h, params["g2"], params["be2"])
    h = jnp.maximum(h, 0.0)
    return h @ params["w3"] + params["b3"]


if __name__ == "__main__":
    key = jax.random.PRNGKey(0)
    k_x, k_p = jax.random.split(key)

    batch, in_features, out_features = 8, 16, 8
    x = jax.random.normal(k_x, (batch, in_features), dtype=jnp.float32)
    params = init_params(k_p, in_features, out_features)
    prepped = prepare_params(params, in_features, out_features)

    forward = build_forward(prepped)
    out = jax.block_until_ready(forward(x))

    ref = mlp_reference(x, params)
    assert out.shape == (batch, out_features)
    assert jnp.allclose(out, ref, atol=1e-4, rtol=1e-4), "mismatch vs JAX reference"

    print("KERNEL_OK")
</pallas_src>

<mosaic_0001>
module attributes {stable_mosaic.version = 11 : i64} {
  func.func @_mlp_kernel(%arg0: memref<8x16xf32, #tpu.memory_space<vmem>>, %arg1: memref<280x128xf32, #tpu.memory_space<vmem>>, %arg2: memref<8x128xf32, #tpu.memory_space<vmem>>) attributes {dimension_semantics = [], scalar_prefetch = 0 : i64, scratch_operands = 0 : i64, tpu.core_type = #tpu.core_type<tc>} {
    %c0 = arith.constant 0 : index
    %c0_0 = arith.constant 0 : index
    %0 = vector.load %arg0[%c0, %c0_0] : memref<8x16xf32, #tpu.memory_space<vmem>>, vector<8x16xf32>
    %c0_1 = arith.constant 0 : index
    %c0_2 = arith.constant 0 : index
    %1 = vector.load %arg1[%c0_1, %c0_2] : memref<280x128xf32, #tpu.memory_space<vmem>>, vector<16x128xf32>
    %cst = arith.constant dense<0.000000e+00> : vector<8x128xf32>
    %2 = tpu.matmul %0, %1, %cst {dimension_numbers = #tpu.dot_dimension_numbers<[1], [0], [0], [1], [0, 0, 1, 1], [], []>} : vector<8x16xf32>, vector<16x128xf32>, vector<8x128xf32> -> vector<8x128xf32>
    %cst_3 = arith.constant dense<0.000000e+00> : vector<128xf32>
    %3 = vector.multi_reduction <add>, %2, %cst_3 [0] : vector<8x128xf32> to vector<128xf32>
    %4 = vector.shape_cast %3 : vector<128xf32> to vector<1x128xf32>
    %cst_4 = arith.constant 8.000000e+00 : f32
    %5 = vector.broadcast %cst_4 : f32 to vector<1x128xf32>
    %6 = arith.divf %4, %5 : vector<1x128xf32>
    %7 = vector.broadcast %6 : vector<1x128xf32> to vector<8x128xf32>
    %8 = arith.subf %2, %7 : vector<8x128xf32>
    %9 = arith.mulf %8, %8 : vector<8x128xf32>
    %cst_5 = arith.constant dense<0.000000e+00> : vector<128xf32>
    %10 = vector.multi_reduction <add>, %9, %cst_5 [0] : vector<8x128xf32> to vector<128xf32>
    %11 = vector.shape_cast %10 : vector<128xf32> to vector<1x128xf32>
    %cst_6 = arith.constant 8.000000e+00 : f32
    %12 = vector.broadcast %cst_6 : f32 to vector<1x128xf32>
    %13 = arith.divf %11, %12 : vector<1x128xf32>
    %cst_7 = arith.constant 9.99999974E-6 : f32
    %14 = vector.broadcast %cst_7 : f32 to vector<1x128xf32>
    %15 = arith.addf %13, %14 : vector<1x128xf32>
    %16 = math.rsqrt %15 : vector<1x128xf32>
    %17 = vector.broadcast %16 : vector<1x128xf32> to vector<8x128xf32>
    %18 = arith.mulf %8, %17 : vector<8x128xf32>
    %c16 = arith.constant 16 : index
    %c0_8 = arith.constant 0 : index
    %19 = vector.load %arg1[%c16, %c0_8] : memref<280x128xf32, #tpu.memory_space<vmem>>, vector<128x128xf32>
    %cst_9 = arith.constant dense<0.000000e+00> : vector<8x128xf32>
    %20 = tpu.matmul %18, %19, %cst_9 {dimension_numbers = #tpu.dot_dimension_numbers<[1], [0], [0], [1], [0, 0, 1, 1], [], []>} : vector<8x128xf32>, vector<128x128xf32>, vector<8x128xf32> -> vector<8x128xf32>
    %cst_10 = arith.constant dense<0.000000e+00> : vector<128xf32>
    %21 = vector.multi_reduction <add>, %20, %cst_10 [0] : vector<8x128xf32> to vector<128xf32>
    %22 = vector.shape_cast %21 : vector<128xf32> to vector<1x128xf32>
    %cst_11 = arith.constant 8.000000e+00 : f32
    %23 = vector.broadcast %cst_11 : f32 to vector<1x128xf32>
    %24 = arith.divf %22, %23 : vector<1x128xf32>
    %25 = vector.broadcast %24 : vector<1x128xf32> to vector<8x128xf32>
    %26 = arith.subf %20, %25 : vector<8x128xf32>
    %27 = arith.mulf %26, %26 : vector<8x128xf32>
    %cst_12 = arith.constant dense<0.000000e+00> : vector<128xf32>
    %28 = vector.multi_reduction <add>, %27, %cst_12 [0] : vector<8x128xf32> to vector<128xf32>
    %29 = vector.shape_cast %28 : vector<128xf32> to vector<1x128xf32>
    %cst_13 = arith.constant 8.000000e+00 : f32
    %30 = vector.broadcast %cst_13 : f32 to vector<1x128xf32>
    %31 = arith.divf %29, %30 : vector<1x128xf32>
    %cst_14 = arith.constant 9.99999974E-6 : f32
    %32 = vector.broadcast %cst_14 : f32 to vector<1x128xf32>
    %33 = arith.addf %31, %32 : vector<1x128xf32>
    %34 = math.rsqrt %33 : vector<1x128xf32>
    %c272 = arith.constant 272 : index
    %c0_15 = arith.constant 0 : index
    %35 = vector.load %arg1[%c272, %c0_15] : memref<280x128xf32, #tpu.memory_space<vmem>>, vector<1x128xf32>
    %c273 = arith.constant 273 : index
    %c0_16 = arith.constant 0 : index
    %36 = vector.load %arg1[%c273, %c0_16] : memref<280x128xf32, #tpu.memory_space<vmem>>, vector<1x128xf32>
    %37 = arith.mulf %35, %34 : vector<1x128xf32>
    %38 = vector.broadcast %37 : vector<1x128xf32> to vector<8x128xf32>
    %39 = arith.mulf %26, %38 : vector<8x128xf32>
    %40 = vector.broadcast %36 : vector<1x128xf32> to vector<8x128xf32>
    %41 = arith.addf %39, %40 : vector<8x128xf32>
    %cst_17 = arith.constant 0.000000e+00 : f32
    %42 = vector.broadcast %cst_17 : f32 to vector<8x128xf32>
    %43 = arith.maximumf %41, %42 : vector<8x128xf32>
    %c144 = arith.constant 144 : index
    %c0_18 = arith.constant 0 : index
    %44 = vector.load %arg1[%c144, %c0_18] : memref<280x128xf32, #tpu.memory_space<vmem>>, vector<128x128xf32>
    %cst_19 = arith.constant dense<0.000000e+00> : vector<8x128xf32>
    %45 = tpu.matmul %43, %44, %cst_19 {dimension_numbers = #tpu.dot_dimension_numbers<[1], [0], [0], [1], [0, 0, 1, 1], [], []>} : vector<8x128xf32>, vector<128x128xf32>, vector<8x128xf32> -> vector<8x128xf32>
    %c274 = arith.constant 274 : index
    %c0_20 = arith.constant 0 : index
    %46 = vector.load %arg1[%c274, %c0_20] : memref<280x128xf32, #tpu.memory_space<vmem>>, vector<1x128xf32>
    %47 = vector.broadcast %46 : vector<1x128xf32> to vector<8x128xf32>
    %48 = arith.addf %45, %47 : vector<8x128xf32>
    %c0_21 = arith.constant 0 : index
    %c0_22 = arith.constant 0 : index
    %49 = vector.load %arg2[%c0_21, %c0_22] : memref<8x128xf32, #tpu.memory_space<vmem>>, vector<8x128xf32>
    tpu.vector_store %arg2[%c0_21, %c0_22], %48 {strides = array<i32>} : memref<8x128xf32, #tpu.memory_space<vmem>>, vector<8x128xf32>,
    return
  }
}

</mosaic_0001>

<llo_original>
// kernel: fwd.1
$region0: #{fwd.1}
  #allocation0 [shape = 'u32[]', space=smem, size = 0x4, offset = 0x4, fixed_abs, tag = 'smem constant byte address 0x4 - core index']
  #allocation1 [shape = 'u32[144,128]{1,0:T(1,128)}', space=vmem, size = 0x12000, scoped, tag = 'internal scratch']
  %s0 = inlined_call_operand.hbm [shape: f32[8,16], index: 0, kind: input, shape index: {}]
  %s1 = inlined_call_operand.hbm [shape: f32[280,128], index: 1, kind: input, shape index: {}]
  %s2 = inlined_call_operand.hbm [shape: f32[8,128], index: 2, kind: output, shape index: {}]
  %s3 = sld [smem:[#allocation0]]
  $region26: #{fwd.1} parent=0
    _
  %s5 = ssub.s32 1, %s3
  %s6 = scalar_select 0, %s5, %s3
  $region1: #{fwd.1} parent=0
    #allocation2 [shape = 'u8[4096]{0}', space=vmem, size = 0x1000, scoped, tag = 'input window, operand 0, single buffered']
    #allocation3 [shape = 's32[1]{0}', space=sflag, size = 0x4, scoped, tag = 'scoped memory for fwd.1']
    #allocation4 [shape = 's32[1]{0}', space=sflag, size = 0x4, scoped, tag = 'scoped memory for fwd.1']
    #allocation5 [shape = 'u8[143360]{0}', space=vmem, size = 0x23000, scoped, tag = 'input window, operand 1, single buffered']
    #allocation6 [shape = 's32[1]{0}', space=sflag, size = 0x4, scoped, tag = 'scoped memory for fwd.1']
    #allocation7 [shape = 'u8[4096]{0}', space=vmem, size = 0x1000, scoped, tag = 'output window, operand 0, single buffered']
    %7 = vsyncpa [#allocation3], 0
    %8 = vsyncpa [#allocation6], 0
    %9 = vsyncpa [#allocation4], 0
    // Predicated region
    $region2: #{fwd.1} parent=1 // pred_check
      _
    $region3: #{fwd.1} parent=1 // pred_check_branch
      %11 = sbr.rel (0) target = $region5
    $region4: #{fwd.1} parent=1 // pred_region
      %s13 = ssub.s32 128, 128
      %14 = vsyncadd [#allocation3], %s13
      %s16 = sshll.u32 [#allocation2], 4
      %s17 = int_to_ptr.vmem [resolvable:$true] %s16
      %19 = dma.hbm_to_vmem [thread:$0]  %s0, 128, %s17, [#allocation3]
    $region5: #{fwd.1} parent=1 // pred_fallthru
      _
    // Predicated region
    $region6: #{fwd.1} parent=1 // pred_check
      _
    $region7: #{fwd.1} parent=1 // pred_check_branch
      %21 = sbr.rel (0) target = $region9
    $region8: #{fwd.1} parent=1 // pred_region
      %s23 = ssub.s32 4480, 4480
      %24 = vsyncadd [#allocation6], %s23
      %s25 = sshll.u32 [#allocation5], 4
      %s26 = int_to_ptr.vmem [resolvable:$true] %s25
      %31 = dma.hbm_to_vmem [thread:$0]  %s1, 4480, %s26, [#allocation6], 128, 128, 8
    $region9: #{fwd.1} parent=1 // pred_fallthru
      _
    // Predicated region
    $region10: #{fwd.1} parent=1 // pred_check
      _
    $region11: #{fwd.1} parent=1 // pred_check_branch
      %33 = sbr.rel (0) target = $region13
    $region12: #{fwd.1} parent=1 // pred_region
      %34 = dma.done [#allocation3], 128
    $region13: #{fwd.1} parent=1 // pred_fallthru
      _
    // Predicated region
    $region14: #{fwd.1} parent=1 // pred_check
      _
    $region15: #{fwd.1} parent=1 // pred_check_branch
      %36 = sbr.rel (0) target = $region17
    $region16: #{fwd.1} parent=1 // pred_region
      %37 = dma.done [#allocation6], 4480
    $region17: #{fwd.1} parent=1 // pred_fallthru
      _
    %v38 = vld [vmem:[#allocation2] sm:$0xff]
    %v39 = vld [vmem:[#allocation5] sm:$0xff]
    %v40 = vld [vmem:[#allocation5 + $0x8] sm:$0xff]
    %vm41 = vcmask 130048
    %v43 = vsel %vm41, %v38, 0
    %45 = vmatprep.subr.mxu0 0.0
    %46 = vmatpush1.msra.mxu0 %v39
    %47 = vmatprep.subr.mxu0 0.0
    %48 = vmatpush1.msra.mxu0 %v40
    %49 = vmatprep.subr.mxu0 0.0
    %50 = vmatpush1.msra.mxu0 0.0
    %51 = vmatprep.subr.mxu0 0.0
    %52 = vmatpush1.msra.mxu0 0.0
    %53 = vmatprep.subr.mxu0 0.0
    %54 = vmatpush1.msra.mxu0 0.0
    %55 = vmatprep.subr.mxu0 0.0
    %56 = vmatpush1.msra.mxu0 0.0
    %57 = vmatprep.subr.mxu0 0.0
    %58 = vmatpush1.msra.mxu0 0.0
    %59 = vmatprep.subr.mxu0 0.0
    %60 = vmatpush1.msra.mxu0 0.0
    %61 = vmatprep.subr.mxu0 0.0
    %62 = vmatpush1.msra.mxu0 0.0
    %63 = vmatprep.subr.mxu0 0.0
    %64 = vmatpush1.msra.mxu0 0.0
    %65 = vmatprep.subr.mxu0 0.0
    %66 = vmatpush1.msra.mxu0 0.0
    %67 = vmatprep.subr.mxu0 0.0
    %68 = vmatpush1.msra.mxu0 0.0
    %69 = vmatprep.subr.mxu0 0.0
    %70 = vmatpush1.msra.mxu0 0.0
    %71 = vmatprep.subr.mxu0 0.0
    %72 = vmatpush1.msra.mxu0 0.0
    %73 = vmatprep.subr.mxu0 0.0
    %74 = vmatpush1.msra.mxu0 0.0
    %75 = vmatprep.subr.mxu0 0.0
    %76 = vmatpush1.msra.mxu0 0.0
    %77 = vmatprep.subr.mxu0 0.0
    %78 = vmatpush1.msra.mxu0 0.0
    %79 = vmatprep.subr.mxu0 0.0
    %80 = vmatpush1.msra.mxu0 0.0
    %81 = vmatprep.subr.mxu0 0.0
    %82 = vmatpush1.msra.mxu0 0.0
    %83 = vmatprep.subr.mxu0 0.0
    %84 = vmatpush1.msra.mxu0 0.0
    %85 = vmatprep.subr.mxu0 0.0
    %86 = vmatpush1.msra.mxu0 0.0
    %87 = vmatprep.subr.mxu0 0.0
    %88 = vmatpush1.msra.mxu0 0.0
    %89 = vmatprep.subr.mxu0 0.0
    %90 = vmatpush1.msra.mxu0 0.0
    %91 = vmatprep.subr.mxu0 0.0
    %92 = vmatpush1.msra.mxu0 0.0
    %93 = vmatprep.subr.mxu0 0.0
    %94 = vmatpush1.msra.mxu0 0.0
    %95 = vmatprep.subr.mxu0 0.0
    %96 = vmatpush1.msra.mxu0 0.0
    %97 = vmatprep.subr.mxu0 0.0
    %98 = vmatpush1.msra.mxu0 0.0
    %99 = vmatprep.subr.mxu0 0.0
    %100 = vmatpush1.msra.mxu0 0.0
    %101 = vmatprep.subr.mxu0 0.0
    %102 = vmatpush1.msra.mxu0 0.0
    %103 = vmatprep.subr.mxu0 0.0
    %104 = vmatpush1.msra.mxu0 0.0
    %105 = vmatprep.subr.mxu0 0.0
    %106 = vmatpush1.msra.mxu0 0.0
    %107 = vmatprep.subr.mxu0 0.0
    %108 = vmatpush1.msra.mxu0 0.0
    %109 = vmatprep.mubr.f32.mxu0 0.0
    %110 = vmatmul.mubr.f32.gmra.mrb[0].mxu0 %v43
    %v111 = vpop.f32.mrb[0].mxu0
    %v112 = vadd.f32 0.0, %v111
    %v113 = vpop.f32.mrb[0].mxu0
    %114 = vdwg.mxu0
    %v115 = vrot.slane %v112, 4
    %v116 = vadd.f32 %v112, %v115
    %v117 = vrot.slane %v116, 2
    %v118 = vadd.f32 %v116, %v117
    %v119 = vrot.slane %v118, 1
    %v120 = vadd.f32 %v118, %v119
    %v121 = vrcp.pop 8.0
    %v122 = vmul.f32 %v120, %v121
    %v123 = vsub.f32 %v112, %v122
    %v124 = vmul.f32 %v123, %v123
    %v125 = vrot.slane %v124, 4
    %v126 = vadd.f32 %v124, %v125
    %v127 = vrot.slane %v126, 2
    %v128 = vadd.f32 %v126, %v127
    %v129 = vrot.slane %v128, 1
    %v130 = vadd.f32 %v128, %v129
    %v131 = vmul.f32 %v130, %v121
    %v132 = vadd.f32 %v131, 1e-05
    %v133 = vrsqrt.pop %v132
    %v134 = vmul.f32 %v123, %v133
    %v135 = vld [vmem:[#allocation5 + $0x10] sm:$0xff]
    %v136 = vld [vmem:[#allocation5 + $0x18] sm:$0xff]
    %v137 = vld [vmem:[#allocation5 + $0x20] sm:$0xff]
    %v138 = vld [vmem:[#allocation5 + $0x28] sm:$0xff]
    %v139 = vld [vmem:[#allocation5 + $0x30] sm:$0xff]
    %v140 = vld [vmem:[#allocation5 + $0x38] sm:$0xff]
    %v141 = vld [vmem:[#allocation5 + $0x40] sm:$0xff]
    %v142 = vld [vmem:[#allocation5 + $0x48] sm:$0xff]
    %v143 = vld [vmem:[#allocation5 + $0x50] sm:$0xff]
    %v144 = vld [vmem:[#allocation5 + $0x58] sm:$0xff]
    %v145 = vld [vmem:[#allocation5 + $0x60] sm:$0xff]
    %v146 = vld [vmem:[#allocation5 + $0x68] sm:$0xff]
    %v147 = vld [vmem:[#allocation5 + $0x70] sm:$0xff]
    %v148 = vld [vmem:[#allocation5 + $0x78] sm:$0xff]
    %v149 = vld [vmem:[#allocation5 + $0x80] sm:$0xff]
    %v150 = vld [vmem:[#allocation5 + $0x88] sm:$0xff]
    %151 = vmatprep.subr.mxu0 0.0
    %152 = vmatpush1.msra.mxu0 %v135
    %153 = vmatprep.subr.mxu0 0.0
    %154 = vmatpush1.msra.mxu0 %v136
    %155 = vmatprep.subr.mxu0 0.0
    %156 = vmatpush1.msra.mxu0 %v137
    %157 = vmatprep.subr.mxu0 0.0
    %158 = vmatpush1.msra.mxu0 %v138
    %159 = vmatprep.subr.mxu0 0.0
    %160 = vmatpush1.msra.mxu0 %v139
    %161 = vmatprep.subr.mxu0 0.0
    %162 = vmatpush1.msra.mxu0 %v140
    %163 = vmatprep.subr.mxu0 0.0
    %164 = vmatpush1.msra.mxu0 %v141
    %165 = vmatprep.subr.mxu0 0.0
    %166 = vmatpush1.msra.mxu0 %v142
    %167 = vmatprep.subr.mxu0 0.0
    %168 = vmatpush1.msra.mxu0 %v143
    %169 = vmatprep.subr.mxu0 0.0
    %170 = vmatpush1.msra.mxu0 %v144
    %171 = vmatprep.subr.mxu0 0.0
    %172 = vmatpush1.msra.mxu0 %v145
    %173 = vmatprep.subr.mxu0 0.0
    %174 = vmatpush1.msra.mxu0 %v146
    %175 = vmatprep.subr.mxu0 0.0
    %176 = vmatpush1.msra.mxu0 %v147
    %177 = vmatprep.subr.mxu0 0.0
    %178 = vmatpush1.msra.mxu0 %v148
    %179 = vmatprep.subr.mxu0 0.0
    %180 = vmatpush1.msra.mxu0 %v149
    %181 = vmatprep.subr.mxu0 0.0
    %182 = vmatpush1.msra.mxu0 %v150
    %183 = vmatprep.subr.mxu0 0.0
    %184 = vmatpush1.msra.mxu0 0.0
    %185 = vmatprep.subr.mxu0 0.0
    %186 = vmatpush1.msra.mxu0 0.0
    %187 = vmatprep.subr.mxu0 0.0
    %188 = vmatpush1.msra.mxu0 0.0
    %189 = vmatprep.subr.mxu0 0.0
    %190 = vmatpush1.msra.mxu0 0.0
    %191 = vmatprep.subr.mxu0 0.0
    %192 = vmatpush1.msra.mxu0 0.0
    %193 = vmatprep.subr.mxu0 0.0
    %194 = vmatpush1.msra.mxu0 0.0
    %195 = vmatprep.subr.mxu0 0.0
    %196 = vmatpush1.msra.mxu0 0.0
    %197 = vmatprep.subr.mxu0 0.0
    %198 = vmatpush1.msra.mxu0 0.0
    %199 = vmatprep.subr.mxu0 0.0
    %200 = vmatpush1.msra.mxu0 0.0
    %201 = vmatprep.subr.mxu0 0.0
    %202 = vmatpush1.msra.mxu0 0.0
    %203 = vmatprep.subr.mxu0 0.0
    %204 = vmatpush1.msra.mxu0 0.0
    %205 = vmatprep.subr.mxu0 0.0
    %206 = vmatpush1.msra.mxu0 0.0
    %207 = vmatprep.subr.mxu0 0.0
    %208 = vmatpush1.msra.mxu0 0.0
    %209 = vmatprep.subr.mxu0 0.0
    %210 = vmatpush1.msra.mxu0 0.0
    %211 = vmatprep.subr.mxu0 0.0
    %212 = vmatpush1.msra.mxu0 0.0
    %213 = vmatprep.subr.mxu0 0.0
    %214 = vmatpush1.msra.mxu0 0.0
    %215 = vmatprep.mubr.f32.mxu0 0.0
    %216 = vmatmul.mubr.f32.gmra.mrb[0].mxu0 %v134
    %v217 = vpop.f32.mrb[0].mxu0
    %v218 = vadd.f32 0.0, %v217
    %v219 = vpop.f32.mrb[0].mxu0
    %220 = vdwg.mxu0
    %v221 = vrot.slane %v218, 4
    %v222 = vadd.f32 %v218, %v221
    %v223 = vrot.slane %v222, 2
    %v224 = vadd.f32 %v222, %v223
    %v225 = vrot.slane %v224, 1
    %v226 = vadd.f32 %v224, %v225
    %v227 = vmul.f32 %v226, %v121
    %v228 = vsub.f32 %v218, %v227
    %v229 = vmul.f32 %v228, %v228
    %v230 = vrot.slane %v229, 4
    %v231 = vadd.f32 %v229, %v230
    %v232 = vrot.slane %v231, 2
    %v233 = vadd.f32 %v231, %v232
    %v234 = vrot.slane %v233, 1
    %v235 = vadd.f32 %v233, %v234
    %v236 = vmul.f32 %v235, %v121
    %v237 = vadd.f32 %v236, 1e-05
    %v238 = vrsqrt.pop %v237
    %v239 = vld [vmem:[#allocation5 + $0x110] sm:$0x1]
    %v240 = vld [vmem:[#allocation5 + $0x111] sm:$0x1]
    %v241 = vmul.f32 %v239, %v238
    %v242 = vlaneseq
    %v243 = vshrl.u32 %v242, 7
    %v244 = vsub.s32 0, %v243
    %v245 = vrot.slane %v241, %v244
    %v246 = vmul.f32 %v228, %v245
    %v247 = vlaneseq
    %v248 = vshrl.u32 %v247, 7
    %v249 = vsub.s32 0, %v248
    %v250 = vrot.slane %v240, %v249
    %v251 = vadd.f32 %v246, %v250
    %v252 = vmax.f32 %v251, 0.0
    %v253 = vld [vmem:[#allocation5 + $0x90] sm:$0xff]
    %v254 = vld [vmem:[#allocation5 + $0x98] sm:$0xff]
    %v255 = vld [vmem:[#allocation5 + $0xa0] sm:$0xff]
    %v256 = vld [vmem:[#allocation5 + $0xa8] sm:$0xff]
    %v257 = vld [vmem:[#allocation5 + $0xb0] sm:$0xff]
    %v258 = vld [vmem:[#allocation5 + $0xb8] sm:$0xff]
    %v259 = vld [vmem:[#allocation5 + $0xc0] sm:$0xff]
    %v260 = vld [vmem:[#allocation5 + $0xc8] sm:$0xff]
    %v261 = vld [vmem:[#allocation5 + $0xd0] sm:$0xff]
    %v262 = vld [vmem:[#allocation5 + $0xd8] sm:$0xff]
    %v263 = vld [vmem:[#allocation5 + $0xe0] sm:$0xff]
    %v264 = vld [vmem:[#allocation5 + $0xe8] sm:$0xff]
    %v265 = vld [vmem:[#allocation5 + $0xf0] sm:$0xff]
    %v266 = vld [vmem:[#allocation5 + $0xf8] sm:$0xff]
    %v267 = vld [vmem:[#allocation5 + $0x100] sm:$0xff]
    %v268 = vld [vmem:[#allocation5 + $0x108] sm:$0xff]
    %v269 = vld [vmem:[#allocation5 + $0x112] sm:$0x1]
    %v270 = vlaneseq
    %v271 = vshrl.u32 %v270, 7
    %v272 = vsub.s32 0, %v271
    %v273 = vrot.slane %v269, %v272
    %274 = vmatprep.subr.mxu0 0.0
    %275 = vmatpush1.msra.mxu0 %v253
    %276 = vmatprep.subr.mxu0 0.0
    %277 = vmatpush1.msra.mxu0 %v254
    %278 = vmatprep.subr.mxu0 0.0
    %279 = vmatpush1.msra.mxu0 %v255
    %280 = vmatprep.subr.mxu0 0.0
    %281 = vmatpush1.msra.mxu0 %v256
    %282 = vmatprep.subr.mxu0 0.0
    %283 = vmatpush1.msra.mxu0 %v257
    %284 = vmatprep.subr.mxu0 0.0
    %285 = vmatpush1.msra.mxu0 %v258
    %286 = vmatprep.subr.mxu0 0.0
    %287 = vmatpush1.msra.mxu0 %v259
    %288 = vmatprep.subr.mxu0 0.0
    %289 = vmatpush1.msra.mxu0 %v260
    %290 = vmatprep.subr.mxu0 0.0
    %291 = vmatpush1.msra.mxu0 %v261
    %292 = vmatprep.subr.mxu0 0.0
    %293 = vmatpush1.msra.mxu0 %v262
    %294 = vmatprep.subr.mxu0 0.0
    %295 = vmatpush1.msra.mxu0 %v263
    %296 = vmatprep.subr.mxu0 0.0
    %297 = vmatpush1.msra.mxu0 %v264
    %298 = vmatprep.subr.mxu0 0.0
    %299 = vmatpush1.msra.mxu0 %v265
    %300 = vmatprep.subr.mxu0 0.0
    %301 = vmatpush1.msra.mxu0 %v266
    %302 = vmatprep.subr.mxu0 0.0
    %303 = vmatpush1.msra.mxu0 %v267
    %304 = vmatprep.subr.mxu0 0.0
    %305 = vmatpush1.msra.mxu0 %v268
    %306 = vmatprep.subr.mxu0 0.0
    %307 = vmatpush1.msra.mxu0 0.0
    %308 = vmatprep.subr.mxu0 0.0
    %309 = vmatpush1.msra.mxu0 0.0
    %310 = vmatprep.subr.mxu0 0.0
    %311 = vmatpush1.msra.mxu0 0.0
    %312 = vmatprep.subr.mxu0 0.0
    %313 = vmatpush1.msra.mxu0 0.0
    %314 = vmatprep.subr.mxu0 0.0
    %315 = vmatpush1.msra.mxu0 0.0
    %316 = vmatprep.subr.mxu0 0.0
    %317 = vmatpush1.msra.mxu0 0.0
    %318 = vmatprep.subr.mxu0 0.0
    %319 = vmatpush1.msra.mxu0 0.0
    %320 = vmatprep.subr.mxu0 0.0
    %321 = vmatpush1.msra.mxu0 0.0
    %322 = vmatprep.subr.mxu0 0.0
    %323 = vmatpush1.msra.mxu0 0.0
    %324 = vmatprep.subr.mxu0 0.0
    %325 = vmatpush1.msra.mxu0 0.0
    %326 = vmatprep.subr.mxu0 0.0
    %327 = vmatpush1.msra.mxu0 0.0
    %328 = vmatprep.subr.mxu0 0.0
    %329 = vmatpush1.msra.mxu0 0.0
    %330 = vmatprep.subr.mxu0 0.0
    %331 = vmatpush1.msra.mxu0 0.0
    %332 = vmatprep.subr.mxu0 0.0
    %333 = vmatpush1.msra.mxu0 0.0
    %334 = vmatprep.subr.mxu0 0.0
    %335 = vmatpush1.msra.mxu0 0.0
    %336 = vmatprep.subr.mxu0 0.0
    %337 = vmatpush1.msra.mxu0 0.0
    %338 = vmatprep.mubr.f32.mxu0 0.0
    %339 = vmatmul.mubr.f32.gmra.mrb[0].mxu0 %v252
    %v340 = vpop.f32.mrb[0].mxu0
    %v341 = vadd.f32 %v273, %v340
    %v342 = vpop.f32.mrb[0].mxu0
    %343 = vdwg.mxu0
    %344 = vst [vmem:[#allocation7] sm:$0xff] %v341
    // Predicated region
    $region18: #{fwd.1} parent=1 // pred_check
      _
    $region19: #{fwd.1} parent=1 // pred_check_branch
      %346 = sbr.rel (0) target = $region21
    $region20: #{fwd.1} parent=1 // pred_region
      %s348 = ssub.s32 128, 128
      %349 = vsyncadd [#allocation4], %s348
      %s351 = sshll.u32 [#allocation7], 4
      %s352 = int_to_ptr.vmem [resolvable:$true] %s351
      %354 = dma.vmem_to_hbm [thread:$0]  %s352, 128, %s2, [#allocation4]
    $region21: #{fwd.1} parent=1 // pred_fallthru
      _
    // Predicated region
    $region22: #{fwd.1} parent=1 // pred_check
      _
    $region23: #{fwd.1} parent=1 // pred_check_branch
      %356 = sbr.rel (0) target = $region25
    $region24: #{fwd.1} parent=1 // pred_region
      %357 = dma.done [#allocation4], 128
    $region25: #{fwd.1} parent=1 // pred_fallthru
      _
    %358 = vsyncpa [#allocation3], 1
    %359 = vsyncpa [#allocation6], 1
    %360 = vsyncpa [#allocation4], 1

</llo_original>
